<compile_context>
chip_gen: v6e
topology: v6e:2x2x1
jax: 0.10.0
libtpu: 0.0.40
codegen_flags: <defaults>
</compile_context>

<pallas_src>
import jax
import jax.numpy as jnp
from jax.experimental import pallas as pl
from jax.experimental.pallas import tpu as pltpu


def attention_simple_kernel(tok_ref, table_ref, q_ref, w_ref, b_ref,
                            out_ref, alpha_ref, emb_scratch):
    """One batch tile.

    tok_ref     : [B*T] int32 token ids in SMEM (scalar prefetch, full array)
    table_ref   : [V, E] f32 embedding table, VMEM-resident (grid-invariant)
    q_ref       : [1, E] f32 attention query vector
    w_ref       : [E, 2] f32 fc weight (pre-transposed from torch [2, E])
    b_ref       : [1, 2] f32 fc bias
    out_ref     : [block_b, 2] f32 fc output tile
    alpha_ref   : [block_b, T] f32 attention weights tile
    emb_scratch : [block_b*T, E] f32 gathered embedding rows
    """
    block_b, T = alpha_ref.shape
    E = table_ref.shape[1]
    R = block_b * T                          # rows gathered for this tile
    base = pl.program_id(0) * R              # first flat token of this tile

    # 1) Embedding gather: ids come from SMEM, rows from the VMEM-resident
    #    table via dynamic-offset [1, E] loads.  No one-hot, no O(V) work.
    # TODO(synk): at real vocab sizes (table >> VMEM) switch the table to
    # memory_space=pl.ANY and double-buffer make_async_copy row DMAs instead.
    @pl.loop(0, R)
    def _gather(r):
        tok = tok_ref[base + r]
        emb_scratch[pl.ds(r, 1), :] = table_ref[pl.ds(tok, 1), :]

    # Split only the leading (non-minor) dim: E stays the lane dim, T the
    # sublane dim -> cheap relayout.
    emb = emb_scratch[...].reshape(block_b, T, E)          # [bb, T, E]

    # 2) Attention logits: q*e on the VPU + lane reduction over E (XLU).
    q = q_ref[...][None, :, :]                              # [1, 1, E]
    logits = jnp.sum(emb * q, axis=-1)                      # [bb, T]

    # 3) Softmax over the sequence axis; exact reciprocal on the EUP.
    m = jnp.max(logits, axis=-1, keepdims=True)             # [bb, 1]
    p = jnp.exp(logits - m)                                 # [bb, T]
    denom = jnp.sum(p, axis=-1, keepdims=True)              # [bb, 1]
    alpha = p * pl.reciprocal(denom, approx=False)          # [bb, T]
    alpha_ref[...] = alpha

    # 4) Attention-weighted reduction over T (sublane reduction per batch row).
    ctx = jnp.sum(emb * alpha[:, :, None], axis=1)          # [bb, E]

    # 5) Final linear layer on the MXU: ctx @ W^T + b (single dense matmul).
    out = jnp.dot(ctx, w_ref[...], preferred_element_type=jnp.float32)
    out_ref[...] = out + b_ref[...]                         # [bb, 2]


def attention_simple(tokens, embedding_table, q, fc_w, fc_b, *, block_b=None):
    """tokens: [B, T] int32; embedding_table: [V, E]; q: [E];
    fc_w: [2, E] (torch Linear layout); fc_b: [2]. Returns (out [B,2], alpha [B,T])."""
    B, T = tokens.shape
    V, E = embedding_table.shape

    # Batch tile.  At demo scale a single grid step is best (~0.35 us fixed
    # overhead per step).  At real scale pick the largest block_b whose tile
    # (block_b*T*E*4 B scratch + outputs, plus the resident V*E*4 B table)
    # fits the per-generation VMEM budget (v7x ~48 MiB usable of 64 MiB,
    # v5e/v6e up to ~100 MiB of 128 MiB) and keep the grid even so v7x's two
    # TensorCores both get work.
    if block_b is None:
        block_b = B
    if B % block_b != 0 or (block_b != B and block_b % 8 != 0):
        block_b = B
    grid = (B // block_b,)

    tok_flat = tokens.reshape(B * T).astype(jnp.int32)     # 1-D -> compact SMEM
    table_f32 = embedding_table.astype(jnp.float32)
    q2 = q.reshape(1, E).astype(jnp.float32)
    w2 = fc_w.T.astype(jnp.float32)                        # [E, 2]
    b2 = fc_b.reshape(1, 2).astype(jnp.float32)

    # Gather formulation: no one-hot matmul term.
    flops = (2 * B * T * E       # logits
             + 2 * B * T * E     # alpha-weighted sum
             + 2 * B * E * 2)    # fc
    bytes_accessed = 4 * (B * T            # token ids
                          + V * E          # table (fetched once, resident)
                          + B * T * E      # gathered rows
                          + E + 2 * E + 2  # q, w, b
                          + B * 2 + B * T) # outputs

    out, alpha = pl.pallas_call(
        attention_simple_kernel,
        grid_spec=pltpu.PrefetchScalarGridSpec(
            num_scalar_prefetch=1,                       # token ids -> SMEM
            grid=grid,
            in_specs=[
                pl.BlockSpec((V, E), lambda i, tok: (0, 0)),   # table (invariant)
                pl.BlockSpec((1, E), lambda i, tok: (0, 0)),   # q
                pl.BlockSpec((E, 2), lambda i, tok: (0, 0)),   # fc weight (pre-T)
                pl.BlockSpec((1, 2), lambda i, tok: (0, 0)),   # fc bias
            ],
            out_specs=(
                pl.BlockSpec((block_b, 2), lambda i, tok: (i, 0)),
                pl.BlockSpec((block_b, T), lambda i, tok: (i, 0)),
            ),
            scratch_shapes=[pltpu.VMEM((block_b * T, E), jnp.float32)],
        ),
        out_shape=(
            jax.ShapeDtypeStruct((B, 2), jnp.float32),   # fc output
            jax.ShapeDtypeStruct((B, T), jnp.float32),   # attention weights
        ),
        compiler_params=pltpu.CompilerParams(
            dimension_semantics=("parallel",),
            vmem_limit_bytes=32 * 1024 * 1024,
        ),
        cost_estimate=pl.CostEstimate(
            flops=flops, transcendentals=B * T, bytes_accessed=bytes_accessed),
    )(tok_flat, table_f32, q2, w2, b2)

    return out, alpha


def _reference(tokens, embedding_table, q, fc_w, fc_b):
    emb = jnp.take(embedding_table, tokens, axis=0).astype(jnp.float32)
    logits = jnp.sum(emb * q[None, None, :], axis=-1)
    alpha = jax.nn.softmax(logits, axis=-1)
    ctx = jnp.sum(emb * alpha[:, :, None], axis=1)
    out = jnp.dot(ctx, fc_w.T, precision=jax.lax.Precision.HIGHEST) + fc_b
    return out, alpha


if __name__ == "__main__":
    key = jax.random.PRNGKey(0)
    k_emb, k_q, k_w, k_b, k_tok = jax.random.split(key, 5)

    VOCAB = 50
    E = 32           # taille_embedding
    B, T = 16, 16    # batch, sequence length (single grid step at demo scale)

    embedding_table = jax.random.normal(k_emb, (VOCAB, E), dtype=jnp.float32)
    q = jax.random.uniform(k_q, (E,), minval=0.0, maxval=1.0, dtype=jnp.float32)
    fc_w = jax.random.normal(k_w, (2, E), dtype=jnp.float32) * (1.0 / jnp.sqrt(E))
    fc_b = jax.random.normal(k_b, (2,), dtype=jnp.float32) * 0.01

    tokens = jax.random.randint(k_tok, (B, T), 0, VOCAB, dtype=jnp.int32)

    out, alpha = attention_simple(tokens, embedding_table, q, fc_w, fc_b)
    out = jax.block_until_ready(out)
    alpha = jax.block_until_ready(alpha)

    ref_out, ref_alpha = _reference(tokens, embedding_table, q, fc_w, fc_b)
    assert out.shape == (B, 2) and alpha.shape == (B, T)
    # Exact gather + exact-reciprocal softmax: tolerance tightened vs v2.
    assert jnp.allclose(alpha, ref_alpha, atol=1e-4, rtol=1e-4), \
        float(jnp.max(jnp.abs(alpha - ref_alpha)))
    assert jnp.allclose(out, ref_out, atol=1e-4, rtol=1e-4), \
        float(jnp.max(jnp.abs(out - ref_out)))

    print("KERNEL_OK")
</pallas_src>

<mosaic_0001>
module attributes {stable_mosaic.version = 11 : i64} {
  func.func @attention_simple_kernel(%arg0: i32, %arg1: memref<256xi32, #tpu.memory_space<smem>>, %arg2: memref<50x32xf32, #tpu.memory_space<vmem>>, %arg3: memref<1x32xf32, #tpu.memory_space<vmem>>, %arg4: memref<32x2xf32, #tpu.memory_space<vmem>>, %arg5: memref<1x2xf32, #tpu.memory_space<vmem>>, %arg6: memref<16x2xf32, #tpu.memory_space<vmem>>, %arg7: memref<16x16xf32, #tpu.memory_space<vmem>>, %arg8: memref<256x32xf32, #tpu.memory_space<vmem>>) attributes {dimension_semantics = [#tpu.dimension_semantics<parallel>], iteration_bounds = array<i64: 1>, scalar_prefetch = 1 : i64, scratch_operands = 1 : i64, tpu.core_type = #tpu.core_type<tc>, window_params = [{pipeline_mode = #tpu.pipeline_mode<synchronous>, transform_indices = @transform_0, window_bounds = array<i64: 50, 32>}, {pipeline_mode = #tpu.pipeline_mode<synchronous>, transform_indices = @transform_1, window_bounds = array<i64: 1, 32>}, {pipeline_mode = #tpu.pipeline_mode<synchronous>, transform_indices = @transform_2, window_bounds = array<i64: 32, 2>}, {pipeline_mode = #tpu.pipeline_mode<synchronous>, transform_indices = @transform_3, window_bounds = array<i64: 1, 2>}, {transform_indices = @transform_4, window_bounds = array<i64: 16, 2>}, {transform_indices = @transform_5, window_bounds = array<i64: 16, 16>}]} {
    %c256_i32 = arith.constant 256 : i32
    %0 = arith.muli %arg0, %c256_i32 : i32
    %c0_i32 = arith.constant 0 : i32
    %c256_i32_0 = arith.constant 256 : i32
    %1 = arith.addi %c0_i32, %c256_i32_0 : i32
    %c1_i32 = arith.constant 1 : i32
    scf.for %arg9 = %c0_i32 to %1 step %c1_i32  : i32 {
      %c1_i32_17 = arith.constant 1 : i32
      %30 = arith.muli %arg9, %c1_i32_17 : i32
      %c0_i32_18 = arith.constant 0 : i32
      %31 = arith.addi %c0_i32_18, %30 : i32
      %32 = arith.addi %0, %31 : i32
      %33 = arith.index_cast %32 : i32 to index
      %34 = memref.load %arg1[%33] : memref<256xi32, #tpu.memory_space<smem>>
      %35 = arith.index_cast %34 : i32 to index
      %c0_19 = arith.constant 0 : index
      %36 = vector.load %arg2[%35, %c0_19] : memref<50x32xf32, #tpu.memory_space<vmem>>, vector<1x32xf32>
      %37 = arith.index_cast %31 : i32 to index
      %c0_20 = arith.constant 0 : index
      %38 = vector.load %arg8[%37, %c0_20] : memref<256x32xf32, #tpu.memory_space<vmem>>, vector<1x32xf32>
      tpu.vector_store %arg8[%37, %c0_20], %36 {strides = array<i32>} : memref<256x32xf32, #tpu.memory_space<vmem>>, vector<1x32xf32>,
    }
    %c256_i32_1 = arith.constant 256 : i32
    %c0 = arith.constant 0 : index
    %c0_2 = arith.constant 0 : index
    %2 = vector.load %arg8[%c0, %c0_2] : memref<256x32xf32, #tpu.memory_space<vmem>>, vector<256x32xf32>
    %3 = vector.shape_cast %2 : vector<256x32xf32> to vector<16x16x32xf32>
    %c0_3 = arith.constant 0 : index
    %c0_4 = arith.constant 0 : index
    %4 = vector.load %arg3[%c0_3, %c0_4] : memref<1x32xf32, #tpu.memory_space<vmem>>, vector<1x32xf32>
    %5 = vector.shape_cast %4 : vector<1x32xf32> to vector<1x1x32xf32>
    %6 = vector.broadcast %5 : vector<1x1x32xf32> to vector<16x16x32xf32>
    %7 = arith.mulf %3, %6 : vector<16x16x32xf32>
    %cst = arith.constant dense<0.000000e+00> : vector<16x16xf32>
    %8 = vector.multi_reduction <add>, %7, %cst [2] : vector<16x16x32xf32> to vector<16x16xf32>
    %cst_5 = arith.constant dense<0xFF800000> : vector<16xf32>
    %9 = vector.multi_reduction <maximumf>, %8, %cst_5 [1] : vector<16x16xf32> to vector<16xf32>
    %10 = vector.shape_cast %9 : vector<16xf32> to vector<16x1xf32>
    %11 = vector.broadcast %10 : vector<16x1xf32> to vector<16x16xf32>
    %12 = arith.subf %8, %11 : vector<16x16xf32>
    %13 = math.exp %12 : vector<16x16xf32>
    %cst_6 = arith.constant dense<0.000000e+00> : vector<16xf32>
    %14 = vector.multi_reduction <add>, %13, %cst_6 [1] : vector<16x16xf32> to vector<16xf32>
    %15 = vector.shape_cast %14 : vector<16xf32> to vector<16x1xf32>
    %16 = tpu.reciprocal %15 : vector<16x1xf32> -> vector<16x1xf32>
    %17 = vector.broadcast %16 : vector<16x1xf32> to vector<16x16xf32>
    %18 = arith.mulf %13, %17 : vector<16x16xf32>
    %c0_7 = arith.constant 0 : index
    %c0_8 = arith.constant 0 : index
    %19 = vector.load %arg7[%c0_7, %c0_8] : memref<16x16xf32, #tpu.memory_space<vmem>>, vector<16x16xf32>
    tpu.vector_store %arg7[%c0_7, %c0_8], %18 {strides = array<i32>} : memref<16x16xf32, #tpu.memory_space<vmem>>, vector<16x16xf32>,
    %20 = vector.shape_cast %18 : vector<16x16xf32> to vector<16x16x1xf32>
    %21 = vector.broadcast %20 : vector<16x16x1xf32> to vector<16x16x32xf32>
    %22 = arith.mulf %3, %21 : vector<16x16x32xf32>
    %cst_9 = arith.constant dense<0.000000e+00> : vector<16x32xf32>
    %23 = vector.multi_reduction <add>, %22, %cst_9 [1] : vector<16x16x32xf32> to vector<16x32xf32>
    %c0_10 = arith.constant 0 : index
    %c0_11 = arith.constant 0 : index
    %24 = vector.load %arg4[%c0_10, %c0_11] : memref<32x2xf32, #tpu.memory_space<vmem>>, vector<32x2xf32>
    %cst_12 = arith.constant dense<0.000000e+00> : vector<16x2xf32>
    %25 = tpu.matmul %23, %24, %cst_12 {dimension_numbers = #tpu.dot_dimension_numbers<[1], [0], [0], [1], [0, 0, 1, 1], [], []>} : vector<16x32xf32>, vector<32x2xf32>, vector<16x2xf32> -> vector<16x2xf32>
    %c0_13 = arith.constant 0 : index
    %c0_14 = arith.constant 0 : index
    %26 = vector.load %arg5[%c0_13, %c0_14] : memref<1x2xf32, #tpu.memory_space<vmem>>, vector<1x2xf32>
    %27 = vector.broadcast %26 : vector<1x2xf32> to vector<16x2xf32>
    %28 = arith.addf %25, %27 : vector<16x2xf32>
    %c0_15 = arith.constant 0 : index
    %c0_16 = arith.constant 0 : index
    %29 = vector.load %arg6[%c0_15, %c0_16] : memref<16x2xf32, #tpu.memory_space<vmem>>, vector<16x2xf32>
    tpu.vector_store %arg6[%c0_15, %c0_16], %28 {strides = array<i32>} : memref<16x2xf32, #tpu.memory_space<vmem>>, vector<16x2xf32>,
    return
  }
  func.func @transform_0(%arg0: i32, %arg1: memref<256xi32, #tpu.memory_space<smem>>) -> (i32, i32) {
    %c0_i32 = arith.constant 0 : i32
    %c0_i32_0 = arith.constant 0 : i32
    %c0_i32_1 = arith.constant 0 : i32
    return %c0_i32, %c0_i32_0 : i32, i32
  }
  func.func @transform_1(%arg0: i32, %arg1: memref<256xi32, #tpu.memory_space<smem>>) -> (i32, i32) {
    %c0_i32 = arith.constant 0 : i32
    %c0_i32_0 = arith.constant 0 : i32
    %c0_i32_1 = arith.constant 0 : i32
    return %c0_i32, %c0_i32_0 : i32, i32
  }
  func.func @transform_2(%arg0: i32, %arg1: memref<256xi32, #tpu.memory_space<smem>>) -> (i32, i32) {
    %c0_i32 = arith.constant 0 : i32
    %c0_i32_0 = arith.constant 0 : i32
    %c0_i32_1 = arith.constant 0 : i32
    return %c0_i32, %c0_i32_0 : i32, i32
  }
  func.func @transform_3(%arg0: i32, %arg1: memref<256xi32, #tpu.memory_space<smem>>) -> (i32, i32) {
    %c0_i32 = arith.constant 0 : i32
    %c0_i32_0 = arith.constant 0 : i32
    %c0_i32_1 = arith.constant 0 : i32
    return %c0_i32, %c0_i32_0 : i32, i32
  }
  func.func @transform_4(%arg0: i32, %arg1: memref<256xi32, #tpu.memory_space<smem>>) -> (i32, i32) {
    %c0_i32 = arith.constant 0 : i32
    %c0_i32_0 = arith.constant 0 : i32
    return %arg0, %c0_i32 : i32, i32
  }
  func.func @transform_5(%arg0: i32, %arg1: memref<256xi32, #tpu.memory_space<smem>>) -> (i32, i32) {
    %c0_i32 = arith.constant 0 : i32
    %c0_i32_0 = arith.constant 0 : i32
    return %arg0, %c0_i32 : i32, i32
  }
}

</mosaic_0001>

<llo_original>
// kernel: tpu_custom_call.1
$region0: #{tpu_custom_call.1}
  #allocation0 [shape = 'u32[]', space=smem, size = 0x4, offset = 0x4, fixed_abs, tag = 'smem constant byte address 0x4 - core index']
  #allocation1 [shape = 'u32[144,128]{1,0:T(1,128)}', space=vmem, size = 0x12000, scoped, tag = 'internal scratch']
  #allocation2 [shape = 'f32[256,32]{1,0:T(8,128)}', space=vmem, size = 0x20000, scoped, tag = 'scratch operand']
  #allocation3 [shape = 's32[1]{0}', space=sflag, size = 0x4, scoped, tag = 'scoped memory for tpu_custom_call.1']
  #allocation4 [shape = 'u8[1024]{0}', space=smem, size = 0x400, scoped, tag = 'prefetched SMEM operand 0']
  %s0 = inlined_call_operand.vmem [shape: s32[256], index: 0, kind: input, shape index: {}]
  %s1 = inlined_call_operand.vmem [shape: f32[50,32], index: 1, kind: input, shape index: {}]
  %s2 = inlined_call_operand.vmem [shape: f32[1,32], index: 2, kind: input, shape index: {}]
  %s3 = inlined_call_operand.vmem [shape: f32[32,2], index: 3, kind: input, shape index: {}]
  %s4 = inlined_call_operand.vmem [shape: f32[1,2], index: 4, kind: input, shape index: {}]
  %s5 = inlined_call_operand.vmem [shape: f32[16,2], index: 5, kind: output, shape index: {0}]
  %s6 = inlined_call_operand.hbm [shape: f32[16,16], index: 6, kind: output, shape index: {1}]
  %7 = xla_tuple %s5, %s6
  %s8 = sld [smem:[#allocation0]]
  $region41: #{tpu_custom_call.1} parent=0
    _
  %s10 = ssub.s32 1, %s8
  %s11 = scalar_select 0, %s10, %s8
  %s12 = sshll.u32 %s0, 4
  %s13 = int_to_ptr.vmem [resolvable:$true] %s12
  %15 = dma.vmem_to_smem %s13, 32, [#allocation4], [#allocation3]
  %16 = dma.done [#allocation3], 32
  %17 = sfence
  $region1: #{tpu_custom_call.1} parent=0
    #allocation5 [shape = 'u8[8192]{0}', space=vmem, size = 0x2000, scoped, tag = 'output window, operand 1, single buffered']
    #allocation6 [shape = 's32[1]{0}', space=sflag, size = 0x4, scoped, tag = 'scoped memory for tpu_custom_call.1']
    %18 = vsyncpa [#allocation6], 0
    // Predicated region
    $region2: #{tpu_custom_call.1} parent=1 // pred_check
      _
    $region3: #{tpu_custom_call.1} parent=1 // pred_check_branch
      %20 = sbr.rel (0) target = $region5
    $region4: #{tpu_custom_call.1} parent=1 // pred_region
      _
    $region5: #{tpu_custom_call.1} parent=1 // pred_fallthru
      _
    // Predicated region
    $region6: #{tpu_custom_call.1} parent=1 // pred_check
      _
    $region7: #{tpu_custom_call.1} parent=1 // pred_check_branch
      %22 = sbr.rel (0) target = $region9
    $region8: #{tpu_custom_call.1} parent=1 // pred_region
      _
    $region9: #{tpu_custom_call.1} parent=1 // pred_fallthru
      _
    // Predicated region
    $region10: #{tpu_custom_call.1} parent=1 // pred_check
      _
    $region11: #{tpu_custom_call.1} parent=1 // pred_check_branch
      %24 = sbr.rel (0) target = $region13
    $region12: #{tpu_custom_call.1} parent=1 // pred_region
      _
    $region13: #{tpu_custom_call.1} parent=1 // pred_fallthru
      _
    // Predicated region
    $region14: #{tpu_custom_call.1} parent=1 // pred_check
      _
    $region15: #{tpu_custom_call.1} parent=1 // pred_check_branch
      %26 = sbr.rel (0) target = $region17
    $region16: #{tpu_custom_call.1} parent=1 // pred_region
      _
    $region17: #{tpu_custom_call.1} parent=1 // pred_fallthru
      _
    %s27 = smul.u32 0, 256
    loop: start=0, step=1, limit=256
    $region18: #{tpu_custom_call.1} parent=1 // loop_pre_header
      _
    $region19: #{tpu_custom_call.1} parent=1 // loop_header
      %s29 = sphi 0, %s33
      %p30 = scmp.ge.s32.totalorder %s29, 256
    $region20: #{tpu_custom_call.1} parent=1 // loop_header_branch
      %32 = sbr.rel (%p30) target = $region24
    $region21: #{tpu_custom_call.1} parent=1 // loop_body
      %s34 = sadd.s32 %s27, %s29
      %s35 = sld [smem:[#allocation4 + %s34]]
      %s36 = scalar_lea.vmem %s1, %s35
      %v37 = vld [vmem:[%s36] sm:$0x1]
      %s38 = scalar_lea.vmem [#allocation2], %s29
      %vm39 = vcmask 253952
      %40 = vst.msk [vmem:[%s38] sm:$0x1] %vm39, %v37
    $region22: #{tpu_custom_call.1} parent=1 // loop_footer
      %s33 = sadd.s32 1, %s29
    $region23: #{tpu_custom_call.1} parent=1 // loop_footer_branch
      %28 = sbr.rel target = $region19
    $region24: #{tpu_custom_call.1} parent=1 // loop_exit
      _
    %v41 = vld [vmem:[#allocation2] sm:$0xff]
    %v42 = vld [vmem:[#allocation2 + $0x8] sm:$0xff]
    %v43 = vld [vmem:[#allocation2 + $0x10] sm:$0xff]
    %v44 = vld [vmem:[#allocation2 + $0x18] sm:$0xff]
    %v45 = vld [vmem:[#allocation2 + $0x20] sm:$0xff]
    %v46 = vld [vmem:[#allocation2 + $0x28] sm:$0xff]
    %v47 = vld [vmem:[#allocation2 + $0x30] sm:$0xff]
    %v48 = vld [vmem:[#allocation2 + $0x38] sm:$0xff]
    %v49 = vld [vmem:[#allocation2 + $0x40] sm:$0xff]
    %v50 = vld [vmem:[#allocation2 + $0x48] sm:$0xff]
    %v51 = vld [vmem:[#allocation2 + $0x50] sm:$0xff]
    %v52 = vld [vmem:[#allocation2 + $0x58] sm:$0xff]
    %v53 = vld [vmem:[#allocation2 + $0x60] sm:$0xff]
    %v54 = vld [vmem:[#allocation2 + $0x68] sm:$0xff]
    %v55 = vld [vmem:[#allocation2 + $0x70] sm:$0xff]
    %v56 = vld [vmem:[#allocation2 + $0x78] sm:$0xff]
    %v57 = vld [vmem:[#allocation2 + $0x80] sm:$0xff]
    %v58 = vld [vmem:[#allocation2 + $0x88] sm:$0xff]
    %v59 = vld [vmem:[#allocation2 + $0x90] sm:$0xff]
    %v60 = vld [vmem:[#allocation2 + $0x98] sm:$0xff]
    %v61 = vld [vmem:[#allocation2 + $0xa0] sm:$0xff]
    %v62 = vld [vmem:[#allocation2 + $0xa8] sm:$0xff]
    %v63 = vld [vmem:[#allocation2 + $0xb0] sm:$0xff]
    %v64 = vld [vmem:[#allocation2 + $0xb8] sm:$0xff]
    %v65 = vld [vmem:[#allocation2 + $0xc0] sm:$0xff]
    %v66 = vld [vmem:[#allocation2 + $0xc8] sm:$0xff]
    %v67 = vld [vmem:[#allocation2 + $0xd0] sm:$0xff]
    %v68 = vld [vmem:[#allocation2 + $0xd8] sm:$0xff]
    %v69 = vld [vmem:[#allocation2 + $0xe0] sm:$0xff]
    %v70 = vld [vmem:[#allocation2 + $0xe8] sm:$0xff]
    %v71 = vld [vmem:[#allocation2 + $0xf0] sm:$0xff]
    %v72 = vld [vmem:[#allocation2 + $0xf8] sm:$0xff]
    %v73 = vld [vmem:[%s2] sm:$0x1]
    %v75 = vlaneseq
    %v76 = vshrl.u32 %v75, 7
    %v77 = vsub.s32 0, %v76
    %v78 = vrot.slane %v73, %v77
    %v80 = vmul.f32 %v41, %v78
    %v81 = vmul.f32 %v42, %v78
    %v82 = vmul.f32 %v43, %v78
    %v83 = vmul.f32 %v44, %v78
    %v84 = vmul.f32 %v45, %v78
    %v85 = vmul.f32 %v46, %v78
    %v86 = vmul.f32 %v47, %v78
    %v87 = vmul.f32 %v48, %v78
    %v88 = vmul.f32 %v49, %v78
    %v89 = vmul.f32 %v50, %v78
    %v90 = vmul.f32 %v51, %v78
    %v91 = vmul.f32 %v52, %v78
    %v92 = vmul.f32 %v53, %v78
    %v93 = vmul.f32 %v54, %v78
    %v94 = vmul.f32 %v55, %v78
    %v95 = vmul.f32 %v56, %v78
    %v96 = vmul.f32 %v57, %v78
    %v97 = vmul.f32 %v58, %v78
    %v98 = vmul.f32 %v59, %v78
    %v99 = vmul.f32 %v60, %v78
    %v100 = vmul.f32 %v61, %v78
    %v101 = vmul.f32 %v62, %v78
    %v102 = vmul.f32 %v63, %v78
    %v103 = vmul.f32 %v64, %v78
    %v104 = vmul.f32 %v65, %v78
    %v105 = vmul.f32 %v66, %v78
    %v106 = vmul.f32 %v67, %v78
    %v107 = vmul.f32 %v68, %v78
    %v108 = vmul.f32 %v69, %v78
    %v109 = vmul.f32 %v70, %v78
    %v110 = vmul.f32 %v71, %v78
    %v111 = vmul.f32 %v72, %v78
    %vm112 = vcmask 261120
    %v113 = vsel %vm112, %v80, 0.0
    %114 = vadd.xlane.f32.xlu0 %v113
    %v115 = vpop.xlane.xlu0 %114
    %v116 = vsel %vm112, %v81, 0.0
    %117 = vadd.xlane.f32.xlu0 %v116
    %v118 = vpop.xlane.xlu0 %117
    %v119 = vsel %vm112, %v82, 0.0
    %120 = vadd.xlane.f32.xlu0 %v119
    %v121 = vpop.xlane.xlu0 %120
    %v122 = vsel %vm112, %v83, 0.0
    %123 = vadd.xlane.f32.xlu0 %v122
    %v124 = vpop.xlane.xlu0 %123
    %v125 = vsel %vm112, %v84, 0.0
    %126 = vadd.xlane.f32.xlu0 %v125
    %v127 = vpop.xlane.xlu0 %126
    %v128 = vsel %vm112, %v85, 0.0
    %129 = vadd.xlane.f32.xlu0 %v128
    %v130 = vpop.xlane.xlu0 %129
    %v131 = vsel %vm112, %v86, 0.0
    %132 = vadd.xlane.f32.xlu0 %v131
    %v133 = vpop.xlane.xlu0 %132
    %v134 = vsel %vm112, %v87, 0.0
    %135 = vadd.xlane.f32.xlu0 %v134
    %v136 = vpop.xlane.xlu0 %135
    %v137 = vsel %vm112, %v88, 0.0
    %138 = vadd.xlane.f32.xlu0 %v137
    %v139 = vpop.xlane.xlu0 %138
    %v140 = vsel %vm112, %v89, 0.0
    %141 = vadd.xlane.f32.xlu0 %v140
    %v142 = vpop.xlane.xlu0 %141
    %v143 = vsel %vm112, %v90, 0.0
    %144 = vadd.xlane.f32.xlu0 %v143
    %v145 = vpop.xlane.xlu0 %144
    %v146 = vsel %vm112, %v91, 0.0
    %147 = vadd.xlane.f32.xlu0 %v146
    %v148 = vpop.xlane.xlu0 %147
    %v149 = vsel %vm112, %v92, 0.0
    %150 = vadd.xlane.f32.xlu0 %v149
    %v151 = vpop.xlane.xlu0 %150
    %v152 = vsel %vm112, %v93, 0.0
    %153 = vadd.xlane.f32.xlu0 %v152
    %v154 = vpop.xlane.xlu0 %153
    %v155 = vsel %vm112, %v94, 0.0
    %156 = vadd.xlane.f32.xlu0 %v155
    %v157 = vpop.xlane.xlu0 %156
    %v158 = vsel %vm112, %v95, 0.0
    %159 = vadd.xlane.f32.xlu0 %v158
    %v160 = vpop.xlane.xlu0 %159
    %v161 = vsel %vm112, %v96, 0.0
    %162 = vadd.xlane.f32.xlu0 %v161
    %v163 = vpop.xlane.xlu0 %162
    %v164 = vsel %vm112, %v97, 0.0
    %165 = vadd.xlane.f32.xlu0 %v164
    %v166 = vpop.xlane.xlu0 %165
    %v167 = vsel %vm112, %v98, 0.0
    %168 = vadd.xlane.f32.xlu0 %v167
    %v169 = vpop.xlane.xlu0 %168
    %v170 = vsel %vm112, %v99, 0.0
    %171 = vadd.xlane.f32.xlu0 %v170
    %v172 = vpop.xlane.xlu0 %171
    %v173 = vsel %vm112, %v100, 0.0
    %174 = vadd.xlane.f32.xlu0 %v173
    %v175 = vpop.xlane.xlu0 %174
    %v176 = vsel %vm112, %v101, 0.0
    %177 = vadd.xlane.f32.xlu0 %v176
    %v178 = vpop.xlane.xlu0 %177
    %v179 = vsel %vm112, %v102, 0.0
    %180 = vadd.xlane.f32.xlu0 %v179
    %v181 = vpop.xlane.xlu0 %180
    %v182 = vsel %vm112, %v103, 0.0
    %183 = vadd.xlane.f32.xlu0 %v182
    %v184 = vpop.xlane.xlu0 %183
    %v185 = vsel %vm112, %v104, 0.0
    %186 = vadd.xlane.f32.xlu0 %v185
    %v187 = vpop.xlane.xlu0 %186
    %v188 = vsel %vm112, %v105, 0.0
    %189 = vadd.xlane.f32.xlu0 %v188
    %v190 = vpop.xlane.xlu0 %189
    %v191 = vsel %vm112, %v106, 0.0
    %192 = vadd.xlane.f32.xlu0 %v191
    %v193 = vpop.xlane.xlu0 %192
    %v194 = vsel %vm112, %v107, 0.0
    %195 = vadd.xlane.f32.xlu0 %v194
    %v196 = vpop.xlane.xlu0 %195
    %v197 = vsel %vm112, %v108, 0.0
    %198 = vadd.xlane.f32.xlu0 %v197
    %v199 = vpop.xlane.xlu0 %198
    %v200 = vsel %vm112, %v109, 0.0
    %201 = vadd.xlane.f32.xlu0 %v200
    %v202 = vpop.xlane.xlu0 %201
    %v203 = vsel %vm112, %v110, 0.0
    %204 = vadd.xlane.f32.xlu0 %v203
    %v205 = vpop.xlane.xlu0 %204
    %v206 = vsel %vm112, %v111, 0.0
    %207 = vadd.xlane.f32.xlu0 %v206
    %v208 = vpop.xlane.xlu0 %207
    %v241 = vlaneseq
    %v242 = vand.u32 %v241, 127
    %v243 = vlaneseq
    %v244 = vshrl.u32 %v243, 7
    %v245 = vsub.s32 %v242, %v244
    %v246 = vrot.slane %v115, %v245
    %v247 = vadd.s32 %v242, 4294967288
    %v248 = vlaneseq
    %v249 = vshrl.u32 %v248, 7
    %v250 = vsub.s32 %v247, %v249
    %v251 = vrot.slane %v118, %v250
    %vm252 = vcmask 130112
    %v253 = vsel %vm252, %v251, %v246
    %v254 = vlaneseq
    %v255 = vshrl.u32 %v254, 7
    %v256 = vsub.s32 %v242, %v255
    %v257 = vrot.slane %v121, %v256
    %v258 = vlaneseq
    %v259 = vshrl.u32 %v258, 7
    %v260 = vsub.s32 %v247, %v259
    %v261 = vrot.slane %v124, %v260
    %v262 = vsel %vm252, %v261, %v257
    %v263 = vlaneseq
    %v264 = vshrl.u32 %v263, 7
    %v265 = vsub.s32 %v242, %v264
    %v266 = vrot.slane %v127, %v265
    %v267 = vlaneseq
    %v268 = vshrl.u32 %v267, 7
    %v269 = vsub.s32 %v247, %v268
    %v270 = vrot.slane %v130, %v269
    %v271 = vsel %vm252, %v270, %v266
    %v272 = vlaneseq
    %v273 = vshrl.u32 %v272, 7
    %v274 = vsub.s32 %v242, %v273
    %v275 = vrot.slane %v133, %v274
    %v276 = vlaneseq
    %v277 = vshrl.u32 %v276, 7
    %v278 = vsub.s32 %v247, %v277
    %v279 = vrot.slane %v136, %v278
    %v280 = vsel %vm252, %v279, %v275
    %v281 = vlaneseq
    %v282 = vshrl.u32 %v281, 7
    %v283 = vsub.s32 %v242, %v282
    %v284 = vrot.slane %v139, %v283
    %v285 = vlaneseq
    %v286 = vshrl.u32 %v285, 7
    %v287 = vsub.s32 %v247, %v286
    %v288 = vrot.slane %v142, %v287
    %v289 = vsel %vm252, %v288, %v284
    %v290 = vlaneseq
    %v291 = vshrl.u32 %v290, 7
    %v292 = vsub.s32 %v242, %v291
    %v293 = vrot.slane %v145, %v292
    %v294 = vlaneseq
    %v295 = vshrl.u32 %v294, 7
    %v296 = vsub.s32 %v247, %v295
    %v297 = vrot.slane %v148, %v296
    %v298 = vsel %vm252, %v297, %v293
    %v299 = vlaneseq
    %v300 = vshrl.u32 %v299, 7
    %v301 = vsub.s32 %v242, %v300
    %v302 = vrot.slane %v151, %v301
    %v303 = vlaneseq
    %v304 = vshrl.u32 %v303, 7
    %v305 = vsub.s32 %v247, %v304
    %v306 = vrot.slane %v154, %v305
    %v307 = vsel %vm252, %v306, %v302
    %v308 = vlaneseq
    %v309 = vshrl.u32 %v308, 7
    %v310 = vsub.s32 %v242, %v309
    %v311 = vrot.slane %v157, %v310
    %v312 = vlaneseq
    %v313 = vshrl.u32 %v312, 7
    %v314 = vsub.s32 %v247, %v313
    %v315 = vrot.slane %v160, %v314
    %v316 = vsel %vm252, %v315, %v311
    %v317 = vlaneseq
    %v318 = vshrl.u32 %v317, 7
    %v319 = vsub.s32 %v242, %v318
    %v320 = vrot.slane %v163, %v319
    %v321 = vlaneseq
    %v322 = vshrl.u32 %v321, 7
    %v323 = vsub.s32 %v247, %v322
    %v324 = vrot.slane %v166, %v323
    %v325 = vsel %vm252, %v324, %v320
    %v326 = vlaneseq
    %v327 = vshrl.u32 %v326, 7
    %v328 = vsub.s32 %v242, %v327
    %v329 = vrot.slane %v169, %v328
    %v330 = vlaneseq
    %v331 = vshrl.u32 %v330, 7
    %v332 = vsub.s32 %v247, %v331
    %v333 = vrot.slane %v172, %v332
    %v334 = vsel %vm252, %v333, %v329
    %v335 = vlaneseq
    %v336 = vshrl.u32 %v335, 7
    %v337 = vsub.s32 %v242, %v336
    %v338 = vrot.slane %v175, %v337
    %v339 = vlaneseq
    %v340 = vshrl.u32 %v339, 7
    %v341 = vsub.s32 %v247, %v340
    %v342 = vrot.slane %v178, %v341
    %v343 = vsel %vm252, %v342, %v338
    %v344 = vlaneseq
    %v345 = vshrl.u32 %v344, 7
    %v346 = vsub.s32 %v242, %v345
    %v347 = vrot.slane %v181, %v346
    %v348 = vlaneseq
    %v349 = vshrl.u32 %v348, 7
    %v350 = vsub.s32 %v247, %v349
    %v351 = vrot.slane %v184, %v350
    %v352 = vsel %vm252, %v351, %v347
    %v353 = vlaneseq
    %v354 = vshrl.u32 %v353, 7
    %v355 = vsub.s32 %v242, %v354
    %v356 = vrot.slane %v187, %v355
    %v357 = vlaneseq
    %v358 = vshrl.u32 %v357, 7
    %v359 = vsub.s32 %v247, %v358
    %v360 = vrot.slane %v190, %v359
    %v361 = vsel %vm252, %v360, %v356
    %v362 = vlaneseq
    %v363 = vshrl.u32 %v362, 7
    %v364 = vsub.s32 %v242, %v363
    %v365 = vrot.slane %v193, %v364
    %v366 = vlaneseq
    %v367 = vshrl.u32 %v366, 7
    %v368 = vsub.s32 %v247, %v367
    %v369 = vrot.slane %v196, %v368
    %v370 = vsel %vm252, %v369, %v365
    %v371 = vlaneseq
    %v372 = vshrl.u32 %v371, 7
    %v373 = vsub.s32 %v242, %v372
    %v374 = vrot.slane %v199, %v373
    %v375 = vlaneseq
    %v376 = vshrl.u32 %v375, 7
    %v377 = vsub.s32 %v247, %v376
    %v378 = vrot.slane %v202, %v377
    %v379 = vsel %vm252, %v378, %v374
    %v380 = vlaneseq
    %v381 = vshrl.u32 %v380, 7
    %v382 = vsub.s32 %v242, %v381
    %v383 = vrot.slane %v205, %v382
    %v384 = vlaneseq
    %v385 = vshrl.u32 %v384, 7
    %v386 = vsub.s32 %v247, %v385
    %v387 = vrot.slane %v208, %v386
    %v388 = vsel %vm252, %v387, %v383
    %vm389 = vcmask 1041409
    %v390 = vsel %vm389, %v262, %v253
    %vm391 = vcmask 1042434
    %v392 = vsel %vm391, %v271, %v390
    %vm393 = vcmask 1043459
    %v394 = vsel %vm393, %v280, %v392
    %vm395 = vcmask 1044484
    %v396 = vsel %vm395, %v289, %v394
    %vm397 = vcmask 1045509
    %v398 = vsel %vm397, %v298, %v396
    %vm399 = vcmask 1046534
    %v400 = vsel %vm399, %v307, %v398
    %vm401 = vcmask 1047559
    %v402 = vsel %vm401, %v316, %v400
    %v403 = vsel %vm389, %v334, %v325
    %v404 = vsel %vm391, %v343, %v403
    %v405 = vsel %vm393, %v352, %v404
    %v406 = vsel %vm395, %v361, %v405
    %v407 = vsel %vm397, %v370, %v406
    %v408 = vsel %vm399, %v379, %v407
    %v409 = vsel %vm401, %v388, %v408
    %vm412 = vcmask 130048
    %v413 = vsel %vm412, %v402, -inf
    %414 = vmax.xlane.f32.xlu0 %v413
    %v415 = vpop.xlane.xlu0 %414
    %v416 = vsel %vm412, %v409, -inf
    %417 = vmax.xlane.f32.xlu0 %v416
    %v418 = vpop.xlane.xlu0 %417
    %v421 = vlaneseq
    %v422 = vshrl.u32 %v421, 7
    %v423 = vsub.s32 0, %v422
    %v424 = vrot.slane %v415, %v423
    %v425 = vlaneseq
    %v426 = vshrl.u32 %v425, 7
    %v427 = vsub.s32 1, %v426
    %v428 = vrot.slane %v415, %v427
    %v429 = vlaneseq
    %v430 = vshrl.u32 %v429, 7
    %v431 = vsub.s32 2, %v430
    %v432 = vrot.slane %v415, %v431
    %v433 = vlaneseq
    %v434 = vshrl.u32 %v433, 7
    %v435 = vsub.s32 3, %v434
    %v436 = vrot.slane %v415, %v435
    %v437 = vlaneseq
    %v438 = vshrl.u32 %v437, 7
    %v439 = vsub.s32 4, %v438
    %v440 = vrot.slane %v415, %v439
    %v441 = vlaneseq
    %v442 = vshrl.u32 %v441, 7
    %v443 = vsub.s32 5, %v442
    %v444 = vrot.slane %v415, %v443
    %v445 = vlaneseq
    %v446 = vshrl.u32 %v445, 7
    %v447 = vsub.s32 6, %v446
    %v448 = vrot.slane %v415, %v447
    %v449 = vlaneseq
    %v450 = vshrl.u32 %v449, 7
    %v451 = vsub.s32 7, %v450
    %v452 = vrot.slane %v415, %v451
    %v453 = vlaneseq
    %v454 = vshrl.u32 %v453, 7
    %v455 = vsub.s32 0, %v454
    %v456 = vrot.slane %v418, %v455
    %v457 = vlaneseq
    %v458 = vshrl.u32 %v457, 7
    %v459 = vsub.s32 1, %v458
    %v460 = vrot.slane %v418, %v459
    %v461 = vlaneseq
    %v462 = vshrl.u32 %v461, 7
    %v463 = vsub.s32 2, %v462
    %v464 = vrot.slane %v418, %v463
    %v465 = vlaneseq
    %v466 = vshrl.u32 %v465, 7
    %v467 = vsub.s32 3, %v466
    %v468 = vrot.slane %v418, %v467
    %v469 = vlaneseq
    %v470 = vshrl.u32 %v469, 7
    %v471 = vsub.s32 4, %v470
    %v472 = vrot.slane %v418, %v471
    %v473 = vlaneseq
    %v474 = vshrl.u32 %v473, 7
    %v475 = vsub.s32 5, %v474
    %v476 = vrot.slane %v418, %v475
    %v477 = vlaneseq
    %v478 = vshrl.u32 %v477, 7
    %v479 = vsub.s32 6, %v478
    %v480 = vrot.slane %v418, %v479
    %v481 = vlaneseq
    %v482 = vshrl.u32 %v481, 7
    %v483 = vsub.s32 7, %v482
    %v484 = vrot.slane %v418, %v483
    %v501 = vsub.f32 %v115, %v424
    %v502 = vsub.f32 %v118, %v424
    %v503 = vsub.f32 %v121, %v428
    %v504 = vsub.f32 %v124, %v428
    %v505 = vsub.f32 %v127, %v432
    %v506 = vsub.f32 %v130, %v432
    %v507 = vsub.f32 %v133, %v436
    %v508 = vsub.f32 %v136, %v436
    %v509 = vsub.f32 %v139, %v440
    %v510 = vsub.f32 %v142, %v440
    %v511 = vsub.f32 %v145, %v444
    %v512 = vsub.f32 %v148, %v444
    %v513 = vsub.f32 %v151, %v448
    %v514 = vsub.f32 %v154, %v448
    %v515 = vsub.f32 %v157, %v452
    %v516 = vsub.f32 %v160, %v452
    %v517 = vsub.f32 %v163, %v456
    %v518 = vsub.f32 %v166, %v456
    %v519 = vsub.f32 %v169, %v460
    %v520 = vsub.f32 %v172, %v460
    %v521 = vsub.f32 %v175, %v464
    %v522 = vsub.f32 %v178, %v464
    %v523 = vsub.f32 %v181, %v468
    %v524 = vsub.f32 %v184, %v468
    %v525 = vsub.f32 %v187, %v472
    %v526 = vsub.f32 %v190, %v472
    %v527 = vsub.f32 %v193, %v476
    %v528 = vsub.f32 %v196, %v476
    %v529 = vsub.f32 %v199, %v480
    %v530 = vsub.f32 %v202, %v480
    %v531 = vsub.f32 %v205, %v484
    %v532 = vsub.f32 %v208, %v484
    %v533 = vmul.f32 %v501, 1.442695
    %v534 = vpow.pop %v533
    %v535 = vmul.f32 %v502, 1.442695
    %v536 = vpow.pop %v535
    %v537 = vmul.f32 %v503, 1.442695
    %v538 = vpow.pop %v537
    %v539 = vmul.f32 %v504, 1.442695
    %v540 = vpow.pop %v539
    %v541 = vmul.f32 %v505, 1.442695
    %v542 = vpow.pop %v541
    %v543 = vmul.f32 %v506, 1.442695
    %v544 = vpow.pop %v543
    %v545 = vmul.f32 %v507, 1.442695
    %v546 = vpow.pop %v545
    %v547 = vmul.f32 %v508, 1.442695
    %v548 = vpow.pop %v547
    %v549 = vmul.f32 %v509, 1.442695
    %v550 = vpow.pop %v549
    %v551 = vmul.f32 %v510, 1.442695
    %v552 = vpow.pop %v551
    %v553 = vmul.f32 %v511, 1.442695
    %v554 = vpow.pop %v553
    %v555 = vmul.f32 %v512, 1.442695
    %v556 = vpow.pop %v555
    %v557 = vmul.f32 %v513, 1.442695
    %v558 = vpow.pop %v557
    %v559 = vmul.f32 %v514, 1.442695
    %v560 = vpow.pop %v559
    %v561 = vmul.f32 %v515, 1.442695
    %v562 = vpow.pop %v561
    %v563 = vmul.f32 %v516, 1.442695
    %v564 = vpow.pop %v563
    %v565 = vmul.f32 %v517, 1.442695
    %v566 = vpow.pop %v565
    %v567 = vmul.f32 %v518, 1.442695
    %v568 = vpow.pop %v567
    %v569 = vmul.f32 %v519, 1.442695
    %v570 = vpow.pop %v569
    %v571 = vmul.f32 %v520, 1.442695
    %v572 = vpow.pop %v571
    %v573 = vmul.f32 %v521, 1.442695
    %v574 = vpow.pop %v573
    %v575 = vmul.f32 %v522, 1.442695
    %v576 = vpow.pop %v575
    %v577 = vmul.f32 %v523, 1.442695
    %v578 = vpow.pop %v577
    %v579 = vmul.f32 %v524, 1.442695
    %v580 = vpow.pop %v579
    %v581 = vmul.f32 %v525, 1.442695
    %v582 = vpow.pop %v581
    %v583 = vmul.f32 %v526, 1.442695
    %v584 = vpow.pop %v583
    %v585 = vmul.f32 %v527, 1.442695
    %v586 = vpow.pop %v585
    %v587 = vmul.f32 %v528, 1.442695
    %v588 = vpow.pop %v587
    %v589 = vmul.f32 %v529, 1.442695
    %v590 = vpow.pop %v589
    %v591 = vmul.f32 %v530, 1.442695
    %v592 = vpow.pop %v591
    %v593 = vmul.f32 %v531, 1.442695
    %v594 = vpow.pop %v593
    %v595 = vmul.f32 %v532, 1.442695
    %v596 = vpow.pop %v595
    %629 = vset.pattern.permute.xlu0 0
    %630 = vperm.xlu0 %629, %v534
    %v631 = vpop.permute.xlu0 %630
    %632 = vset.pattern.permute.xlu0 0
    %633 = vperm.xlu0 %632, %v536
    %v634 = vpop.permute.xlu0 %633
    %635 = vset.pattern.permute.xlu0 0
    %636 = vperm.xlu0 %635, %v538
    %v637 = vpop.permute.xlu0 %636
    %638 = vset.pattern.permute.xlu0 0
    %639 = vperm.xlu0 %638, %v540
    %v640 = vpop.permute.xlu0 %639
    %641 = vset.pattern.permute.xlu0 0
    %642 = vperm.xlu0 %641, %v542
    %v643 = vpop.permute.xlu0 %642
    %644 = vset.pattern.permute.xlu0 0
    %645 = vperm.xlu0 %644, %v544
    %v646 = vpop.permute.xlu0 %645
    %647 = vset.pattern.permute.xlu0 0
    %648 = vperm.xlu0 %647, %v546
    %v649 = vpop.permute.xlu0 %648
    %650 = vset.pattern.permute.xlu0 0
    %651 = vperm.xlu0 %650, %v548
    %v652 = vpop.permute.xlu0 %651
    %653 = vset.pattern.permute.xlu0 0
    %654 = vperm.xlu0 %653, %v550
    %v655 = vpop.permute.xlu0 %654
    %656 = vset.pattern.permute.xlu0 0
    %657 = vperm.xlu0 %656, %v552
    %v658 = vpop.permute.xlu0 %657
    %659 = vset.pattern.permute.xlu0 0
    %660 = vperm.xlu0 %659, %v554
    %v661 = vpop.permute.xlu0 %660
    %662 = vset.pattern.permute.xlu0 0
    %663 = vperm.xlu0 %662, %v556
    %v664 = vpop.permute.xlu0 %663
    %665 = vset.pattern.permute.xlu0 0
    %666 = vperm.xlu0 %665, %v558
    %v667 = vpop.permute.xlu0 %666
    %668 = vset.pattern.permute.xlu0 0
    %669 = vperm.xlu0 %668, %v560
    %v670 = vpop.permute.xlu0 %669
    %671 = vset.pattern.permute.xlu0 0
    %672 = vperm.xlu0 %671, %v562
    %v673 = vpop.permute.xlu0 %672
    %674 = vset.pattern.permute.xlu0 0
    %675 = vperm.xlu0 %674, %v564
    %v676 = vpop.permute.xlu0 %675
    %677 = vset.pattern.permute.xlu0 0
    %678 = vperm.xlu0 %677, %v566
    %v679 = vpop.permute.xlu0 %678
    %680 = vset.pattern.permute.xlu0 0
    %681 = vperm.xlu0 %680, %v568
    %v682 = vpop.permute.xlu0 %681
    %683 = vset.pattern.permute.xlu0 0
    %684 = vperm.xlu0 %683, %v570
    %v685 = vpop.permute.xlu0 %684
    %686 = vset.pattern.permute.xlu0 0
    %687 = vperm.xlu0 %686, %v572
    %v688 = vpop.permute.xlu0 %687
    %689 = vset.pattern.permute.xlu0 0
    %690 = vperm.xlu0 %689, %v574
    %v691 = vpop.permute.xlu0 %690
    %692 = vset.pattern.permute.xlu0 0
    %693 = vperm.xlu0 %692, %v576
    %v694 = vpop.permute.xlu0 %693
    %695 = vset.pattern.permute.xlu0 0
    %696 = vperm.xlu0 %695, %v578
    %v697 = vpop.permute.xlu0 %696
    %698 = vset.pattern.permute.xlu0 0
    %699 = vperm.xlu0 %698, %v580
    %v700 = vpop.permute.xlu0 %699
    %701 = vset.pattern.permute.xlu0 0
    %702 = vperm.xlu0 %701, %v582
    %v703 = vpop.permute.xlu0 %702
    %704 = vset.pattern.permute.xlu0 0
    %705 = vperm.xlu0 %704, %v584
    %v706 = vpop.permute.xlu0 %705
    %707 = vset.pattern.permute.xlu0 0
    %708 = vperm.xlu0 %707, %v586
    %v709 = vpop.permute.xlu0 %708
    %710 = vset.pattern.permute.xlu0 0
    %711 = vperm.xlu0 %710, %v588
    %v712 = vpop.permute.xlu0 %711
    %713 = vset.pattern.permute.xlu0 0
    %714 = vperm.xlu0 %713, %v590
    %v715 = vpop.permute.xlu0 %714
    %716 = vset.pattern.permute.xlu0 0
    %717 = vperm.xlu0 %716, %v592
    %v718 = vpop.permute.xlu0 %717
    %719 = vset.pattern.permute.xlu0 0
    %720 = vperm.xlu0 %719, %v594
    %v721 = vpop.permute.xlu0 %720
    %722 = vset.pattern.permute.xlu0 0
    %723 = vperm.xlu0 %722, %v596
    %v724 = vpop.permute.xlu0 %723
    %v725 = vlaneseq
    %v726 = vshrl.u32 %v725, 7
    %v727 = vsub.s32 %v242, %v726
    %v728 = vrot.slane %v631, %v727
    %v729 = vlaneseq
    %v730 = vshrl.u32 %v729, 7
    %v731 = vsub.s32 %v247, %v730
    %v732 = vrot.slane %v634, %v731
    %v733 = vsel %vm252, %v732, %v728
    %v734 = vlaneseq
    %v735 = vshrl.u32 %v734, 7
    %v736 = vsub.s32 %v242, %v735
    %v737 = vrot.slane %v637, %v736
    %v738 = vlaneseq
    %v739 = vshrl.u32 %v738, 7
    %v740 = vsub.s32 %v247, %v739
    %v741 = vrot.slane %v640, %v740
    %v742 = vsel %vm252, %v741, %v737
    %v743 = vlaneseq
    %v744 = vshrl.u32 %v743, 7
    %v745 = vsub.s32 %v242, %v744
    %v746 = vrot.slane %v643, %v745
    %v747 = vlaneseq
    %v748 = vshrl.u32 %v747, 7
    %v749 = vsub.s32 %v247, %v748
    %v750 = vrot.slane %v646, %v749
    %v751 = vsel %vm252, %v750, %v746
    %v752 = vlaneseq
    %v753 = vshrl.u32 %v752, 7
    %v754 = vsub.s32 %v242, %v753
    %v755 = vrot.slane %v649, %v754
    %v756 = vlaneseq
    %v757 = vshrl.u32 %v756, 7
    %v758 = vsub.s32 %v247, %v757
    %v759 = vrot.slane %v652, %v758
    %v760 = vsel %vm252, %v759, %v755
    %v761 = vlaneseq
    %v762 = vshrl.u32 %v761, 7
    %v763 = vsub.s32 %v242, %v762
    %v764 = vrot.slane %v655, %v763
    %v765 = vlaneseq
    %v766 = vshrl.u32 %v765, 7
    %v767 = vsub.s32 %v247, %v766
    %v768 = vrot.slane %v658, %v767
    %v769 = vsel %vm252, %v768, %v764
    %v770 = vlaneseq
    %v771 = vshrl.u32 %v770, 7
    %v772 = vsub.s32 %v242, %v771
    %v773 = vrot.slane %v661, %v772
    %v774 = vlaneseq
    %v775 = vshrl.u32 %v774, 7
    %v776 = vsub.s32 %v247, %v775
    %v777 = vrot.slane %v664, %v776
    %v778 = vsel %vm252, %v777, %v773
    %v779 = vlaneseq
    %v780 = vshrl.u32 %v779, 7
    %v781 = vsub.s32 %v242, %v780
    %v782 = vrot.slane %v667, %v781
    %v783 = vlaneseq
    %v784 = vshrl.u32 %v783, 7
    %v785 = vsub.s32 %v247, %v784
    %v786 = vrot.slane %v670, %v785
    %v787 = vsel %vm252, %v786, %v782
    %v788 = vlaneseq
    %v789 = vshrl.u32 %v788, 7
    %v790 = vsub.s32 %v242, %v789
    %v791 = vrot.slane %v673, %v790
    %v792 = vlaneseq
    %v793 = vshrl.u32 %v792, 7
    %v794 = vsub.s32 %v247, %v793
    %v795 = vrot.slane %v676, %v794
    %v796 = vsel %vm252, %v795, %v791
    %v797 = vlaneseq
    %v798 = vshrl.u32 %v797, 7
    %v799 = vsub.s32 %v242, %v798
    %v800 = vrot.slane %v679, %v799
    %v801 = vlaneseq
    %v802 = vshrl.u32 %v801, 7
    %v803 = vsub.s32 %v247, %v802
    %v804 = vrot.slane %v682, %v803
    %v805 = vsel %vm252, %v804, %v800
    %v806 = vlaneseq
    %v807 = vshrl.u32 %v806, 7
    %v808 = vsub.s32 %v242, %v807
    %v809 = vrot.slane %v685, %v808
    %v810 = vlaneseq
    %v811 = vshrl.u32 %v810, 7
    %v812 = vsub.s32 %v247, %v811
    %v813 = vrot.slane %v688, %v812
    %v814 = vsel %vm252, %v813, %v809
    %v815 = vlaneseq
    %v816 = vshrl.u32 %v815, 7
    %v817 = vsub.s32 %v242, %v816
    %v818 = vrot.slane %v691, %v817
    %v819 = vlaneseq
    %v820 = vshrl.u32 %v819, 7
    %v821 = vsub.s32 %v247, %v820
    %v822 = vrot.slane %v694, %v821
    %v823 = vsel %vm252, %v822, %v818
    %v824 = vlaneseq
    %v825 = vshrl.u32 %v824, 7
    %v826 = vsub.s32 %v242, %v825
    %v827 = vrot.slane %v697, %v826
    %v828 = vlaneseq
    %v829 = vshrl.u32 %v828, 7
    %v830 = vsub.s32 %v247, %v829
    %v831 = vrot.slane %v700, %v830
    %v832 = vsel %vm252, %v831, %v827
    %v833 = vlaneseq
    %v834 = vshrl.u32 %v833, 7
    %v835 = vsub.s32 %v242, %v834
    %v836 = vrot.slane %v703, %v835
    %v837 = vlaneseq
    %v838 = vshrl.u32 %v837, 7
    %v839 = vsub.s32 %v247, %v838
    %v840 = vrot.slane %v706, %v839
    %v841 = vsel %vm252, %v840, %v836
    %v842 = vlaneseq
    %v843 = vshrl.u32 %v842, 7
    %v844 = vsub.s32 %v242, %v843
    %v845 = vrot.slane %v709, %v844
    %v846 = vlaneseq
    %v847 = vshrl.u32 %v846, 7
    %v848 = vsub.s32 %v247, %v847
    %v849 = vrot.slane %v712, %v848
    %v850 = vsel %vm252, %v849, %v845
    %v851 = vlaneseq
    %v852 = vshrl.u32 %v851, 7
    %v853 = vsub.s32 %v242, %v852
    %v854 = vrot.slane %v715, %v853
    %v855 = vlaneseq
    %v856 = vshrl.u32 %v855, 7
    %v857 = vsub.s32 %v247, %v856
    %v858 = vrot.slane %v718, %v857
    %v859 = vsel %vm252, %v858, %v854
    %v860 = vlaneseq
    %v861 = vshrl.u32 %v860, 7
    %v862 = vsub.s32 %v242, %v861
    %v863 = vrot.slane %v721, %v862
    %v864 = vlaneseq
    %v865 = vshrl.u32 %v864, 7
    %v866 = vsub.s32 %v247, %v865
    %v867 = vrot.slane %v724, %v866
    %v868 = vsel %vm252, %v867, %v863
    %v869 = vsel %vm389, %v742, %v733
    %v870 = vsel %vm391, %v751, %v869
    %v871 = vsel %vm393, %v760, %v870
    %v872 = vsel %vm395, %v769, %v871
    %v873 = vsel %vm397, %v778, %v872
    %v874 = vsel %vm399, %v787, %v873
    %v875 = vsel %vm401, %v796, %v874
    %v876 = vsel %vm389, %v814, %v805
    %v877 = vsel %vm391, %v823, %v876
    %v878 = vsel %vm393, %v832, %v877
    %v879 = vsel %vm395, %v841, %v878
    %v880 = vsel %vm397, %v850, %v879
    %v881 = vsel %vm399, %v859, %v880
    %v882 = vsel %vm401, %v868, %v881
    %v885 = vsel %vm412, %v875, 0.0
    %886 = vadd.xlane.f32.xlu0 %v885
    %v887 = vpop.xlane.xlu0 %886
    %v888 = vsel %vm412, %v882, 0.0
    %889 = vadd.xlane.f32.xlu0 %v888
    %v890 = vpop.xlane.xlu0 %889
    %v891 = vrcp.pop %v887
    %v892 = vrcp.pop %v890
    %v895 = vlaneseq
    %v896 = vshrl.u32 %v895, 7
    %v897 = vsub.s32 0, %v896
    %v898 = vrot.slane %v891, %v897
    %v899 = vlaneseq
    %v900 = vshrl.u32 %v899, 7
    %v901 = vsub.s32 1, %v900
    %v902 = vrot.slane %v891, %v901
    %v903 = vlaneseq
    %v904 = vshrl.u32 %v903, 7
    %v905 = vsub.s32 2, %v904
    %v906 = vrot.slane %v891, %v905
    %v907 = vlaneseq
    %v908 = vshrl.u32 %v907, 7
    %v909 = vsub.s32 3, %v908
    %v910 = vrot.slane %v891, %v909
    %v911 = vlaneseq
    %v912 = vshrl.u32 %v911, 7
    %v913 = vsub.s32 4, %v912
    %v914 = vrot.slane %v891, %v913
    %v915 = vlaneseq
    %v916 = vshrl.u32 %v915, 7
    %v917 = vsub.s32 5, %v916
    %v918 = vrot.slane %v891, %v917
    %v919 = vlaneseq
    %v920 = vshrl.u32 %v919, 7
    %v921 = vsub.s32 6, %v920
    %v922 = vrot.slane %v891, %v921
    %v923 = vlaneseq
    %v924 = vshrl.u32 %v923, 7
    %v925 = vsub.s32 7, %v924
    %v926 = vrot.slane %v891, %v925
    %v927 = vlaneseq
    %v928 = vshrl.u32 %v927, 7
    %v929 = vsub.s32 0, %v928
    %v930 = vrot.slane %v892, %v929
    %v931 = vlaneseq
    %v932 = vshrl.u32 %v931, 7
    %v933 = vsub.s32 1, %v932
    %v934 = vrot.slane %v892, %v933
    %v935 = vlaneseq
    %v936 = vshrl.u32 %v935, 7
    %v937 = vsub.s32 2, %v936
    %v938 = vrot.slane %v892, %v937
    %v939 = vlaneseq
    %v940 = vshrl.u32 %v939, 7
    %v941 = vsub.s32 3, %v940
    %v942 = vrot.slane %v892, %v941
    %v943 = vlaneseq
    %v944 = vshrl.u32 %v943, 7
    %v945 = vsub.s32 4, %v944
    %v946 = vrot.slane %v892, %v945
    %v947 = vlaneseq
    %v948 = vshrl.u32 %v947, 7
    %v949 = vsub.s32 5, %v948
    %v950 = vrot.slane %v892, %v949
    %v951 = vlaneseq
    %v952 = vshrl.u32 %v951, 7
    %v953 = vsub.s32 6, %v952
    %v954 = vrot.slane %v892, %v953
    %v955 = vlaneseq
    %v956 = vshrl.u32 %v955, 7
    %v957 = vsub.s32 7, %v956
    %v958 = vrot.slane %v892, %v957
    %v975 = vmul.f32 %v534, %v898
    %v976 = vmul.f32 %v536, %v898
    %v977 = vmul.f32 %v538, %v902
    %v978 = vmul.f32 %v540, %v902
    %v979 = vmul.f32 %v542, %v906
    %v980 = vmul.f32 %v544, %v906
    %v981 = vmul.f32 %v546, %v910
    %v982 = vmul.f32 %v548, %v910
    %v983 = vmul.f32 %v550, %v914
    %v984 = vmul.f32 %v552, %v914
    %v985 = vmul.f32 %v554, %v918
    %v986 = vmul.f32 %v556, %v918
    %v987 = vmul.f32 %v558, %v922
    %v988 = vmul.f32 %v560, %v922
    %v989 = vmul.f32 %v562, %v926
    %v990 = vmul.f32 %v564, %v926
    %v991 = vmul.f32 %v566, %v930
    %v992 = vmul.f32 %v568, %v930
    %v993 = vmul.f32 %v570, %v934
    %v994 = vmul.f32 %v572, %v934
    %v995 = vmul.f32 %v574, %v938
    %v996 = vmul.f32 %v576, %v938
    %v997 = vmul.f32 %v578, %v942
    %v998 = vmul.f32 %v580, %v942
    %v999 = vmul.f32 %v582, %v946
    %v1000 = vmul.f32 %v584, %v946
    %v1001 = vmul.f32 %v586, %v950
    %v1002 = vmul.f32 %v588, %v950
    %v1003 = vmul.f32 %v590, %v954
    %v1004 = vmul.f32 %v592, %v954
    %v1005 = vmul.f32 %v594, %v958
    %v1006 = vmul.f32 %v596, %v958
    %1039 = vset.pattern.permute.xlu0 0
    %1040 = vperm.xlu0 %1039, %v975
    %v1041 = vpop.permute.xlu0 %1040
    %1042 = vset.pattern.permute.xlu0 0
    %1043 = vperm.xlu0 %1042, %v976
    %v1044 = vpop.permute.xlu0 %1043
    %1045 = vset.pattern.permute.xlu0 0
    %1046 = vperm.xlu0 %1045, %v977
    %v1047 = vpop.permute.xlu0 %1046
    %1048 = vset.pattern.permute.xlu0 0
    %1049 = vperm.xlu0 %1048, %v978
    %v1050 = vpop.permute.xlu0 %1049
    %1051 = vset.pattern.permute.xlu0 0
    %1052 = vperm.xlu0 %1051, %v979
    %v1053 = vpop.permute.xlu0 %1052
    %1054 = vset.pattern.permute.xlu0 0
    %1055 = vperm.xlu0 %1054, %v980
    %v1056 = vpop.permute.xlu0 %1055
    %1057 = vset.pattern.permute.xlu0 0
    %1058 = vperm.xlu0 %1057, %v981
    %v1059 = vpop.permute.xlu0 %1058
    %1060 = vset.pattern.permute.xlu0 0
    %1061 = vperm.xlu0 %1060, %v982
    %v1062 = vpop.permute.xlu0 %1061
    %1063 = vset.pattern.permute.xlu0 0
    %1064 = vperm.xlu0 %1063, %v983
    %v1065 = vpop.permute.xlu0 %1064
    %1066 = vset.pattern.permute.xlu0 0
    %1067 = vperm.xlu0 %1066, %v984
    %v1068 = vpop.permute.xlu0 %1067
    %1069 = vset.pattern.permute.xlu0 0
    %1070 = vperm.xlu0 %1069, %v985
    %v1071 = vpop.permute.xlu0 %1070
    %1072 = vset.pattern.permute.xlu0 0
    %1073 = vperm.xlu0 %1072, %v986
    %v1074 = vpop.permute.xlu0 %1073
    %1075 = vset.pattern.permute.xlu0 0
    %1076 = vperm.xlu0 %1075, %v987
    %v1077 = vpop.permute.xlu0 %1076
    %1078 = vset.pattern.permute.xlu0 0
    %1079 = vperm.xlu0 %1078, %v988
    %v1080 = vpop.permute.xlu0 %1079
    %1081 = vset.pattern.permute.xlu0 0
    %1082 = vperm.xlu0 %1081, %v989
    %v1083 = vpop.permute.xlu0 %1082
    %1084 = vset.pattern.permute.xlu0 0
    %1085 = vperm.xlu0 %1084, %v990
    %v1086 = vpop.permute.xlu0 %1085
    %1087 = vset.pattern.permute.xlu0 0
    %1088 = vperm.xlu0 %1087, %v991
    %v1089 = vpop.permute.xlu0 %1088
    %1090 = vset.pattern.permute.xlu0 0
    %1091 = vperm.xlu0 %1090, %v992
    %v1092 = vpop.permute.xlu0 %1091
    %1093 = vset.pattern.permute.xlu0 0
    %1094 = vperm.xlu0 %1093, %v993
    %v1095 = vpop.permute.xlu0 %1094
    %1096 = vset.pattern.permute.xlu0 0
    %1097 = vperm.xlu0 %1096, %v994
    %v1098 = vpop.permute.xlu0 %1097
    %1099 = vset.pattern.permute.xlu0 0
    %1100 = vperm.xlu0 %1099, %v995
    %v1101 = vpop.permute.xlu0 %1100
    %1102 = vset.pattern.permute.xlu0 0
    %1103 = vperm.xlu0 %1102, %v996
    %v1104 = vpop.permute.xlu0 %1103
    %1105 = vset.pattern.permute.xlu0 0
    %1106 = vperm.xlu0 %1105, %v997
    %v1107 = vpop.permute.xlu0 %1106
    %1108 = vset.pattern.permute.xlu0 0
    %1109 = vperm.xlu0 %1108, %v998
    %v1110 = vpop.permute.xlu0 %1109
    %1111 = vset.pattern.permute.xlu0 0
    %1112 = vperm.xlu0 %1111, %v999
    %v1113 = vpop.permute.xlu0 %1112
    %1114 = vset.pattern.permute.xlu0 0
    %1115 = vperm.xlu0 %1114, %v1000
    %v1116 = vpop.permute.xlu0 %1115
    %1117 = vset.pattern.permute.xlu0 0
    %1118 = vperm.xlu0 %1117, %v1001
    %v1119 = vpop.permute.xlu0 %1118
    %1120 = vset.pattern.permute.xlu0 0
    %1121 = vperm.xlu0 %1120, %v1002
    %v1122 = vpop.permute.xlu0 %1121
    %1123 = vset.pattern.permute.xlu0 0
    %1124 = vperm.xlu0 %1123, %v1003
    %v1125 = vpop.permute.xlu0 %1124
    %1126 = vset.pattern.permute.xlu0 0
    %1127 = vperm.xlu0 %1126, %v1004
    %v1128 = vpop.permute.xlu0 %1127
    %1129 = vset.pattern.permute.xlu0 0
    %1130 = vperm.xlu0 %1129, %v1005
    %v1131 = vpop.permute.xlu0 %1130
    %1132 = vset.pattern.permute.xlu0 0
    %1133 = vperm.xlu0 %1132, %v1006
    %v1134 = vpop.permute.xlu0 %1133
    %v1135 = vlaneseq
    %v1136 = vshrl.u32 %v1135, 7
    %v1137 = vsub.s32 %v242, %v1136
    %v1138 = vrot.slane %v1041, %v1137
    %v1139 = vlaneseq
    %v1140 = vshrl.u32 %v1139, 7
    %v1141 = vsub.s32 %v247, %v1140
    %v1142 = vrot.slane %v1044, %v1141
    %v1143 = vsel %vm252, %v1142, %v1138
    %v1144 = vlaneseq
    %v1145 = vshrl.u32 %v1144, 7
    %v1146 = vsub.s32 %v242, %v1145
    %v1147 = vrot.slane %v1047, %v1146
    %v1148 = vlaneseq
    %v1149 = vshrl.u32 %v1148, 7
    %v1150 = vsub.s32 %v247, %v1149
    %v1151 = vrot.slane %v1050, %v1150
    %v1152 = vsel %vm252, %v1151, %v1147
    %v1153 = vlaneseq
    %v1154 = vshrl.u32 %v1153, 7
    %v1155 = vsub.s32 %v242, %v1154
    %v1156 = vrot.slane %v1053, %v1155
    %v1157 = vlaneseq
    %v1158 = vshrl.u32 %v1157, 7
    %v1159 = vsub.s32 %v247, %v1158
    %v1160 = vrot.slane %v1056, %v1159
    %v1161 = vsel %vm252, %v1160, %v1156
    %v1162 = vlaneseq
    %v1163 = vshrl.u32 %v1162, 7
    %v1164 = vsub.s32 %v242, %v1163
    %v1165 = vrot.slane %v1059, %v1164
    %v1166 = vlaneseq
    %v1167 = vshrl.u32 %v1166, 7
    %v1168 = vsub.s32 %v247, %v1167
    %v1169 = vrot.slane %v1062, %v1168
    %v1170 = vsel %vm252, %v1169, %v1165
    %v1171 = vlaneseq
    %v1172 = vshrl.u32 %v1171, 7
    %v1173 = vsub.s32 %v242, %v1172
    %v1174 = vrot.slane %v1065, %v1173
    %v1175 = vlaneseq
    %v1176 = vshrl.u32 %v1175, 7
    %v1177 = vsub.s32 %v247, %v1176
    %v1178 = vrot.slane %v1068, %v1177
    %v1179 = vsel %vm252, %v1178, %v1174
    %v1180 = vlaneseq
    %v1181 = vshrl.u32 %v1180, 7
    %v1182 = vsub.s32 %v242, %v1181
    %v1183 = vrot.slane %v1071, %v1182
    %v1184 = vlaneseq
    %v1185 = vshrl.u32 %v1184, 7
    %v1186 = vsub.s32 %v247, %v1185
    %v1187 = vrot.slane %v1074, %v1186
    %v1188 = vsel %vm252, %v1187, %v1183
    %v1189 = vlaneseq
    %v1190 = vshrl.u32 %v1189, 7
    %v1191 = vsub.s32 %v242, %v1190
    %v1192 = vrot.slane %v1077, %v1191
    %v1193 = vlaneseq
    %v1194 = vshrl.u32 %v1193, 7
    %v1195 = vsub.s32 %v247, %v1194
    %v1196 = vrot.slane %v1080, %v1195
    %v1197 = vsel %vm252, %v1196, %v1192
    %v1198 = vlaneseq
    %v1199 = vshrl.u32 %v1198, 7
    %v1200 = vsub.s32 %v242, %v1199
    %v1201 = vrot.slane %v1083, %v1200
    %v1202 = vlaneseq
    %v1203 = vshrl.u32 %v1202, 7
    %v1204 = vsub.s32 %v247, %v1203
    %v1205 = vrot.slane %v1086, %v1204
    %v1206 = vsel %vm252, %v1205, %v1201
    %v1207 = vlaneseq
    %v1208 = vshrl.u32 %v1207, 7
    %v1209 = vsub.s32 %v242, %v1208
    %v1210 = vrot.slane %v1089, %v1209
    %v1211 = vlaneseq
    %v1212 = vshrl.u32 %v1211, 7
    %v1213 = vsub.s32 %v247, %v1212
    %v1214 = vrot.slane %v1092, %v1213
    %v1215 = vsel %vm252, %v1214, %v1210
    %v1216 = vlaneseq
    %v1217 = vshrl.u32 %v1216, 7
    %v1218 = vsub.s32 %v242, %v1217
    %v1219 = vrot.slane %v1095, %v1218
    %v1220 = vlaneseq
    %v1221 = vshrl.u32 %v1220, 7
    %v1222 = vsub.s32 %v247, %v1221
    %v1223 = vrot.slane %v1098, %v1222
    %v1224 = vsel %vm252, %v1223, %v1219
    %v1225 = vlaneseq
    %v1226 = vshrl.u32 %v1225, 7
    %v1227 = vsub.s32 %v242, %v1226
    %v1228 = vrot.slane %v1101, %v1227
    %v1229 = vlaneseq
    %v1230 = vshrl.u32 %v1229, 7
    %v1231 = vsub.s32 %v247, %v1230
    %v1232 = vrot.slane %v1104, %v1231
    %v1233 = vsel %vm252, %v1232, %v1228
    %v1234 = vlaneseq
    %v1235 = vshrl.u32 %v1234, 7
    %v1236 = vsub.s32 %v242, %v1235
    %v1237 = vrot.slane %v1107, %v1236
    %v1238 = vlaneseq
    %v1239 = vshrl.u32 %v1238, 7
    %v1240 = vsub.s32 %v247, %v1239
    %v1241 = vrot.slane %v1110, %v1240
    %v1242 = vsel %vm252, %v1241, %v1237
    %v1243 = vlaneseq
    %v1244 = vshrl.u32 %v1243, 7
    %v1245 = vsub.s32 %v242, %v1244
    %v1246 = vrot.slane %v1113, %v1245
    %v1247 = vlaneseq
    %v1248 = vshrl.u32 %v1247, 7
    %v1249 = vsub.s32 %v247, %v1248
    %v1250 = vrot.slane %v1116, %v1249
    %v1251 = vsel %vm252, %v1250, %v1246
    %v1252 = vlaneseq
    %v1253 = vshrl.u32 %v1252, 7
    %v1254 = vsub.s32 %v242, %v1253
    %v1255 = vrot.slane %v1119, %v1254
    %v1256 = vlaneseq
    %v1257 = vshrl.u32 %v1256, 7
    %v1258 = vsub.s32 %v247, %v1257
    %v1259 = vrot.slane %v1122, %v1258
    %v1260 = vsel %vm252, %v1259, %v1255
    %v1261 = vlaneseq
    %v1262 = vshrl.u32 %v1261, 7
    %v1263 = vsub.s32 %v242, %v1262
    %v1264 = vrot.slane %v1125, %v1263
    %v1265 = vlaneseq
    %v1266 = vshrl.u32 %v1265, 7
    %v1267 = vsub.s32 %v247, %v1266
    %v1268 = vrot.slane %v1128, %v1267
    %v1269 = vsel %vm252, %v1268, %v1264
    %v1270 = vlaneseq
    %v1271 = vshrl.u32 %v1270, 7
    %v1272 = vsub.s32 %v242, %v1271
    %v1273 = vrot.slane %v1131, %v1272
    %v1274 = vlaneseq
    %v1275 = vshrl.u32 %v1274, 7
    %v1276 = vsub.s32 %v247, %v1275
    %v1277 = vrot.slane %v1134, %v1276
    %v1278 = vsel %vm252, %v1277, %v1273
    %v1279 = vsel %vm389, %v1152, %v1143
    %v1280 = vsel %vm391, %v1161, %v1279
    %v1281 = vsel %vm393, %v1170, %v1280
    %v1282 = vsel %vm395, %v1179, %v1281
    %v1283 = vsel %vm397, %v1188, %v1282
    %v1284 = vsel %vm399, %v1197, %v1283
    %v1285 = vsel %vm401, %v1206, %v1284
    %v1286 = vsel %vm389, %v1224, %v1215
    %v1287 = vsel %vm391, %v1233, %v1286
    %v1288 = vsel %vm393, %v1242, %v1287
    %v1289 = vsel %vm395, %v1251, %v1288
    %v1290 = vsel %vm397, %v1260, %v1289
    %v1291 = vsel %vm399, %v1269, %v1290
    %v1292 = vsel %vm401, %v1278, %v1291
    %1295 = vst.msk [vmem:[#allocation5] sm:$0xff] %vm412, %v1285
    %1296 = vst.msk [vmem:[#allocation5 + $0x8] sm:$0xff] %vm412, %v1292
    %v1329 = vmul.f32 %v41, %v1041
    %v1330 = vmul.f32 %v42, %v1044
    %v1331 = vmul.f32 %v43, %v1047
    %v1332 = vmul.f32 %v44, %v1050
    %v1333 = vmul.f32 %v45, %v1053
    %v1334 = vmul.f32 %v46, %v1056
    %v1335 = vmul.f32 %v47, %v1059
    %v1336 = vmul.f32 %v48, %v1062
    %v1337 = vmul.f32 %v49, %v1065
    %v1338 = vmul.f32 %v50, %v1068
    %v1339 = vmul.f32 %v51, %v1071
    %v1340 = vmul.f32 %v52, %v1074
    %v1341 = vmul.f32 %v53, %v1077
    %v1342 = vmul.f32 %v54, %v1080
    %v1343 = vmul.f32 %v55, %v1083
    %v1344 = vmul.f32 %v56, %v1086
    %v1345 = vmul.f32 %v57, %v1089
    %v1346 = vmul.f32 %v58, %v1092
    %v1347 = vmul.f32 %v59, %v1095
    %v1348 = vmul.f32 %v60, %v1098
    %v1349 = vmul.f32 %v61, %v1101
    %v1350 = vmul.f32 %v62, %v1104
    %v1351 = vmul.f32 %v63, %v1107
    %v1352 = vmul.f32 %v64, %v1110
    %v1353 = vmul.f32 %v65, %v1113
    %v1354 = vmul.f32 %v66, %v1116
    %v1355 = vmul.f32 %v67, %v1119
    %v1356 = vmul.f32 %v68, %v1122
    %v1357 = vmul.f32 %v69, %v1125
    %v1358 = vmul.f32 %v70, %v1128
    %v1359 = vmul.f32 %v71, %v1131
    %v1360 = vmul.f32 %v72, %v1134
    %v1361 = vsel %vm112, %v1329, 0.0
    %v1362 = vsel %vm112, %v1330, 0.0
    %v1363 = vadd.f32 %v1361, %v1362
    %v1364 = vrot.slane %v1363, 4
    %v1365 = vadd.f32 %v1363, %v1364
    %v1366 = vrot.slane %v1365, 2
    %v1367 = vadd.f32 %v1365, %v1366
    %v1368 = vrot.slane %v1367, 1
    %v1369 = vadd.f32 %v1367, %v1368
    %v1370 = vsel %vm112, %v1331, 0.0
    %v1371 = vsel %vm112, %v1332, 0.0
    %v1372 = vadd.f32 %v1370, %v1371
    %v1373 = vrot.slane %v1372, 4
    %v1374 = vadd.f32 %v1372, %v1373
    %v1375 = vrot.slane %v1374, 2
    %v1376 = vadd.f32 %v1374, %v1375
    %v1377 = vrot.slane %v1376, 1
    %v1378 = vadd.f32 %v1376, %v1377
    %v1379 = vsel %vm112, %v1333, 0.0
    %v1380 = vsel %vm112, %v1334, 0.0
    %v1381 = vadd.f32 %v1379, %v1380
    %v1382 = vrot.slane %v1381, 4
    %v1383 = vadd.f32 %v1381, %v1382
    %v1384 = vrot.slane %v1383, 2
    %v1385 = vadd.f32 %v1383, %v1384
    %v1386 = vrot.slane %v1385, 1
    %v1387 = vadd.f32 %v1385, %v1386
    %v1388 = vsel %vm112, %v1335, 0.0
    %v1389 = vsel %vm112, %v1336, 0.0
    %v1390 = vadd.f32 %v1388, %v1389
    %v1391 = vrot.slane %v1390, 4
    %v1392 = vadd.f32 %v1390, %v1391
    %v1393 = vrot.slane %v1392, 2
    %v1394 = vadd.f32 %v1392, %v1393
    %v1395 = vrot.slane %v1394, 1
    %v1396 = vadd.f32 %v1394, %v1395
    %v1397 = vsel %vm112, %v1337, 0.0
    %v1398 = vsel %vm112, %v1338, 0.0
    %v1399 = vadd.f32 %v1397, %v1398
    %v1400 = vrot.slane %v1399, 4
    %v1401 = vadd.f32 %v1399, %v1400
    %v1402 = vrot.slane %v1401, 2
    %v1403 = vadd.f32 %v1401, %v1402
    %v1404 = vrot.slane %v1403, 1
    %v1405 = vadd.f32 %v1403, %v1404
    %v1406 = vsel %vm112, %v1339, 0.0
    %v1407 = vsel %vm112, %v1340, 0.0
    %v1408 = vadd.f32 %v1406, %v1407
    %v1409 = vrot.slane %v1408, 4
    %v1410 = vadd.f32 %v1408, %v1409
    %v1411 = vrot.slane %v1410, 2
    %v1412 = vadd.f32 %v1410, %v1411
    %v1413 = vrot.slane %v1412, 1
    %v1414 = vadd.f32 %v1412, %v1413
    %v1415 = vsel %vm112, %v1341, 0.0
    %v1416 = vsel %vm112, %v1342, 0.0
    %v1417 = vadd.f32 %v1415, %v1416
    %v1418 = vrot.slane %v1417, 4
    %v1419 = vadd.f32 %v1417, %v1418
    %v1420 = vrot.slane %v1419, 2
    %v1421 = vadd.f32 %v1419, %v1420
    %v1422 = vrot.slane %v1421, 1
    %v1423 = vadd.f32 %v1421, %v1422
    %v1424 = vsel %vm112, %v1343, 0.0
    %v1425 = vsel %vm112, %v1344, 0.0
    %v1426 = vadd.f32 %v1424, %v1425
    %v1427 = vrot.slane %v1426, 4
    %v1428 = vadd.f32 %v1426, %v1427
    %v1429 = vrot.slane %v1428, 2
    %v1430 = vadd.f32 %v1428, %v1429
    %v1431 = vrot.slane %v1430, 1
    %v1432 = vadd.f32 %v1430, %v1431
    %v1433 = vsel %vm112, %v1345, 0.0
    %v1434 = vsel %vm112, %v1346, 0.0
    %v1435 = vadd.f32 %v1433, %v1434
    %v1436 = vrot.slane %v1435, 4
    %v1437 = vadd.f32 %v1435, %v1436
    %v1438 = vrot.slane %v1437, 2
    %v1439 = vadd.f32 %v1437, %v1438
    %v1440 = vrot.slane %v1439, 1
    %v1441 = vadd.f32 %v1439, %v1440
    %v1442 = vsel %vm112, %v1347, 0.0
    %v1443 = vsel %vm112, %v1348, 0.0
    %v1444 = vadd.f32 %v1442, %v1443
    %v1445 = vrot.slane %v1444, 4
    %v1446 = vadd.f32 %v1444, %v1445
    %v1447 = vrot.slane %v1446, 2
    %v1448 = vadd.f32 %v1446, %v1447
    %v1449 = vrot.slane %v1448, 1
    %v1450 = vadd.f32 %v1448, %v1449
    %v1451 = vsel %vm112, %v1349, 0.0
    %v1452 = vsel %vm112, %v1350, 0.0
    %v1453 = vadd.f32 %v1451, %v1452
    %v1454 = vrot.slane %v1453, 4
    %v1455 = vadd.f32 %v1453, %v1454
    %v1456 = vrot.slane %v1455, 2
    %v1457 = vadd.f32 %v1455, %v1456
    %v1458 = vrot.slane %v1457, 1
    %v1459 = vadd.f32 %v1457, %v1458
    %v1460 = vsel %vm112, %v1351, 0.0
    %v1461 = vsel %vm112, %v1352, 0.0
    %v1462 = vadd.f32 %v1460, %v1461
    %v1463 = vrot.slane %v1462, 4
    %v1464 = vadd.f32 %v1462, %v1463
    %v1465 = vrot.slane %v1464, 2
    %v1466 = vadd.f32 %v1464, %v1465
    %v1467 = vrot.slane %v1466, 1
    %v1468 = vadd.f32 %v1466, %v1467
    %v1469 = vsel %vm112, %v1353, 0.0
    %v1470 = vsel %vm112, %v1354, 0.0
    %v1471 = vadd.f32 %v1469, %v1470
    %v1472 = vrot.slane %v1471, 4
    %v1473 = vadd.f32 %v1471, %v1472
    %v1474 = vrot.slane %v1473, 2
    %v1475 = vadd.f32 %v1473, %v1474
    %v1476 = vrot.slane %v1475, 1
    %v1477 = vadd.f32 %v1475, %v1476
    %v1478 = vsel %vm112, %v1355, 0.0
    %v1479 = vsel %vm112, %v1356, 0.0
    %v1480 = vadd.f32 %v1478, %v1479
    %v1481 = vrot.slane %v1480, 4
    %v1482 = vadd.f32 %v1480, %v1481
    %v1483 = vrot.slane %v1482, 2
    %v1484 = vadd.f32 %v1482, %v1483
    %v1485 = vrot.slane %v1484, 1
    %v1486 = vadd.f32 %v1484, %v1485
    %v1487 = vsel %vm112, %v1357, 0.0
    %v1488 = vsel %vm112, %v1358, 0.0
    %v1489 = vadd.f32 %v1487, %v1488
    %v1490 = vrot.slane %v1489, 4
    %v1491 = vadd.f32 %v1489, %v1490
    %v1492 = vrot.slane %v1491, 2
    %v1493 = vadd.f32 %v1491, %v1492
    %v1494 = vrot.slane %v1493, 1
    %v1495 = vadd.f32 %v1493, %v1494
    %v1496 = vsel %vm112, %v1359, 0.0
    %v1497 = vsel %vm112, %v1360, 0.0
    %v1498 = vadd.f32 %v1496, %v1497
    %v1499 = vrot.slane %v1498, 4
    %v1500 = vadd.f32 %v1498, %v1499
    %v1501 = vrot.slane %v1500, 2
    %v1502 = vadd.f32 %v1500, %v1501
    %v1503 = vrot.slane %v1502, 1
    %v1504 = vadd.f32 %v1502, %v1503
    %v1505 = vld [vmem:[%s3] sm:$0xff]
    %v1506 = vld [vmem:[%s3 + $0x8] sm:$0xff]
    %v1507 = vld [vmem:[%s3 + $0x10] sm:$0xff]
    %v1508 = vld [vmem:[%s3 + $0x18] sm:$0xff]
    %v1509 = vld [vmem:[%s4] sm:$0x1]
    %v1511 = vlaneseq
    %v1512 = vshrl.u32 %v1511, 7
    %v1513 = vsub.s32 0, %v1512
    %v1514 = vrot.slane %v1509, %v1513
    %v1532 = vsel %vm389, %v1378, %v1369
    %v1533 = vsel %vm391, %v1387, %v1532
    %v1534 = vsel %vm393, %v1396, %v1533
    %v1535 = vsel %vm395, %v1405, %v1534
    %v1536 = vsel %vm397, %v1414, %v1535
    %v1537 = vsel %vm399, %v1423, %v1536
    %v1538 = vsel %vm401, %v1432, %v1537
    %v1539 = vsel %vm389, %v1450, %v1441
    %v1540 = vsel %vm391, %v1459, %v1539
    %v1541 = vsel %vm393, %v1468, %v1540
    %v1542 = vsel %vm395, %v1477, %v1541
    %v1543 = vsel %vm397, %v1486, %v1542
    %v1544 = vsel %vm399, %v1495, %v1543
    %v1545 = vsel %vm401, %v1504, %v1544
    %v1546 = vsel %vm112, %v1538, 0
    %v1548 = vsel %vm112, %v1545, 0
    %1550 = vmatprep.subr.mxu0 0.0
    %1551 = vmatpush1.msra.mxu0 0.0
    %1552 = vmatprep.subr.mxu0 0.0
    %1553 = vmatpush1.msra.mxu0 0.0
    %1554 = vmatprep.subr.mxu0 0.0
    %1555 = vmatpush1.msra.mxu0 0.0
    %1556 = vmatprep.subr.mxu0 0.0
    %1557 = vmatpush1.msra.mxu0 0.0
    %1558 = vmatprep.subr.mxu0 0.0
    %1559 = vmatpush1.msra.mxu0 0.0
    %1560 = vmatprep.subr.mxu0 0.0
    %1561 = vmatpush1.msra.mxu0 0.0
    %1562 = vmatprep.subr.mxu0 0.0
    %1563 = vmatpush1.msra.mxu0 0.0
    %1564 = vmatprep.subr.mxu0 0.0
    %1565 = vmatpush1.msra.mxu0 0.0
    %1566 = vmatprep.subr.mxu0 0.0
    %1567 = vmatpush1.msra.mxu0 0.0
    %1568 = vmatprep.subr.mxu0 0.0
    %1569 = vmatpush1.msra.mxu0 0.0
    %1570 = vmatprep.subr.mxu0 0.0
    %1571 = vmatpush1.msra.mxu0 0.0
    %1572 = vmatprep.subr.mxu0 0.0
    %1573 = vmatpush1.msra.mxu0 0.0
    %1574 = vmatprep.subr.mxu0 0.0
    %1575 = vmatpush1.msra.mxu0 %v1508
    %1576 = vmatprep.subr.mxu0 0.0
    %1577 = vmatpush1.msra.mxu0 %v1507
    %1578 = vmatprep.subr.mxu0 0.0
    %1579 = vmatpush1.msra.mxu0 %v1506
    %1580 = vmatprep.subr.mxu0 0.0
    %1581 = vmatpush1.msra.mxu0 %v1505
    %1582 = vmatprep.subr.mxu0 0.0
    %1583 = vmatpush2.msra.mxu0 0.0
    %1584 = vmatprep.subr.mxu0 0.0
    %1585 = vmatpush2.msra.mxu0 0.0
    %1586 = vmatprep.subr.mxu0 0.0
    %1587 = vmatpush2.msra.mxu0 0.0
    %1588 = vmatprep.subr.mxu0 0.0
    %1589 = vmatpush2.msra.mxu0 0.0
    %1590 = vmatprep.subr.mxu0 0.0
    %1591 = vmatpush2.msra.mxu0 0.0
    %1592 = vmatprep.subr.mxu0 0.0
    %1593 = vmatpush2.msra.mxu0 0.0
    %1594 = vmatprep.subr.mxu0 0.0
    %1595 = vmatpush2.msra.mxu0 0.0
    %1596 = vmatprep.subr.mxu0 0.0
    %1597 = vmatpush2.msra.mxu0 0.0
    %1598 = vmatprep.subr.mxu0 0.0
    %1599 = vmatpush2.msra.mxu0 0.0
    %1600 = vmatprep.subr.mxu0 0.0
    %1601 = vmatpush2.msra.mxu0 0.0
    %1602 = vmatprep.subr.mxu0 0.0
    %1603 = vmatpush2.msra.mxu0 0.0
    %1604 = vmatprep.subr.mxu0 0.0
    %1605 = vmatpush2.msra.mxu0 0.0
    %1606 = vmatprep.subr.mxu0 0.0
    %1607 = vmatpush2.msra.mxu0 0.0
    %1608 = vmatprep.subr.mxu0 0.0
    %1609 = vmatpush2.msra.mxu0 0.0
    %1610 = vmatprep.subr.mxu0 0.0
    %1611 = vmatpush2.msra.mxu0 0.0
    %1612 = vmatprep.subr.mxu0 0.0
    %1613 = vmatpush2.msra.mxu0 0.0
    %1614 = vmatprep.mubr.f32.mxu0 0.0
    %1615 = vmatmul.mubr.f32.gmra.mxu0 %v1546
    %v1616 = vpop.f32.mrf.mxu0
    %v1617 = vadd.f32 %v1514, %v1616
    %v1618 = vpop.f32.mrf.mxu0
    %1619 = vmatprep.mubr.f32.mxu0 0.0
    %1620 = vmatmul.mubr.f32.gmra.mxu0 %v1548
    %v1621 = vpop.f32.mrf.mxu0
    %v1622 = vadd.f32 %v1514, %v1621
    %v1623 = vpop.f32.mrf.mxu0
    %1624 = vdwg.mxu0
    %vm1625 = vcmask 15360
    %1626 = vst.msk [vmem:[%s5] sm:$0xff] %vm1625, %v1617
    %1627 = vst.msk [vmem:[%s5 + $0x8] sm:$0xff] %vm1625, %v1622
    // Predicated region
    $region25: #{tpu_custom_call.1} parent=1 // pred_check
      _
    $region26: #{tpu_custom_call.1} parent=1 // pred_check_branch
      %1629 = sbr.rel (0) target = $region28
    $region27: #{tpu_custom_call.1} parent=1 // pred_region
      _
    $region28: #{tpu_custom_call.1} parent=1 // pred_fallthru
      _
    // Predicated region
    $region29: #{tpu_custom_call.1} parent=1 // pred_check
      _
    $region30: #{tpu_custom_call.1} parent=1 // pred_check_branch
      %1631 = sbr.rel (0) target = $region32
    $region31: #{tpu_custom_call.1} parent=1 // pred_region
      %s1633 = ssub.s32 256, 256
      %1634 = vsyncadd [#allocation6], %s1633
      %s1635 = sshll.u32 [#allocation5], 4
      %s1636 = int_to_ptr.vmem [resolvable:$true] %s1635
      %1641 = dma.vmem_to_hbm [thread:$0]  %s1636, 256, %s6, [#allocation6], 128, 128, 8
    $region32: #{tpu_custom_call.1} parent=1 // pred_fallthru
      _
    // Predicated region
    $region33: #{tpu_custom_call.1} parent=1 // pred_check
      _
    $region34: #{tpu_custom_call.1} parent=1 // pred_check_branch
      %1643 = sbr.rel (0) target = $region36
    $region35: #{tpu_custom_call.1} parent=1 // pred_region
      _
    $region36: #{tpu_custom_call.1} parent=1 // pred_fallthru
      _
    // Predicated region
    $region37: #{tpu_custom_call.1} parent=1 // pred_check
      _
    $region38: #{tpu_custom_call.1} parent=1 // pred_check_branch
      %1645 = sbr.rel (0) target = $region40
    $region39: #{tpu_custom_call.1} parent=1 // pred_region
      %1646 = dma.done [#allocation6], 256
    $region40: #{tpu_custom_call.1} parent=1 // pred_fallthru
      _
    %1647 = vsyncpa [#allocation6], 1

</llo_original>
